<compile_context>
chip_gen: v7x
topology: tpu7x:2x2x1
jax: 0.10.0
libtpu: 0.0.40
codegen_flags: <defaults>
</compile_context>

<pallas_src>
import functools

import jax
import jax.numpy as jnp
from jax import lax
from jax.experimental import pallas as pl
from jax.experimental.pallas import tpu as pltpu


def _round_up(x, m):
    return (x + m - 1) // m * m


def _hash_u32(x):
    """Cheap avalanche mix on uint32 (counter-based RNG); pure jnp ops so it
    lowers on both the Mosaic TPU backend and interpret mode."""
    x = x ^ (x >> 16)
    x = x * jnp.uint32(0x7FEB352D)
    x = x ^ (x >> 15)
    x = x * jnp.uint32(0x846CA68B)
    x = x ^ (x >> 16)
    return x


def _uniform01(shape, salt_u32):
    """Per-element uniform [0, 1) from (row, col, salt)."""
    rows = lax.broadcasted_iota(jnp.int32, shape, 0).astype(jnp.uint32)
    cols = lax.broadcasted_iota(jnp.int32, shape, 1).astype(jnp.uint32)
    x = rows * jnp.uint32(0x01000193) + cols
    x = x + salt_u32 * jnp.uint32(0x9E3779B1)
    bits = _hash_u32(x)
    # Top 24 bits -> nonnegative int32 -> exact f32 in [0, 2^24).
    bits24 = (bits >> 8).astype(jnp.int32)
    return bits24.astype(jnp.float32) * (1.0 / float(1 << 24))


def mlp_kernel(seed_ref,                                 # scalar prefetch (SMEM)
               x_ref, w1_ref, b1_ref, w2_ref, b2_ref,
               w3_ref, b3_ref, wo_ref, bo_ref,           # inputs (VMEM)
               o_ref,                                    # output (VMEM)
               *, train):
    seed_u32 = seed_ref[0].astype(jnp.uint32)
    tile_u32 = pl.program_id(0).astype(jnp.uint32)

    def maybe_drop(h, keep_prob, layer):
        if (not train) or keep_prob >= 1.0:
            return h
        salt = (seed_u32
                + jnp.uint32(layer) * jnp.uint32(0x9E3779B9)
                + tile_u32 * jnp.uint32(0x85EBCA6B))
        u = _uniform01(h.shape, salt)
        return jnp.where(u < keep_prob, h * (1.0 / keep_prob), 0.0)

    def linear(h, w_ref, b_ref):
        # bf16 operands on the MXU, f32 accumulation, f32 bias add.
        return jnp.dot(h.astype(jnp.bfloat16), w_ref[...],
                       preferred_element_type=jnp.float32) + b_ref[...]

    h = x_ref[...].astype(jnp.float32)
    h = maybe_drop(h, 0.8, 0)                                 # dropout_input
    h = jnp.maximum(linear(h, w1_ref, b1_ref), 0.0)           # fc1 + relu
    h = maybe_drop(h, 0.5, 1)                                 # dropout1
    h = jnp.maximum(linear(h, w2_ref, b2_ref), 0.0)           # fc2 + relu
    h = maybe_drop(h, 0.5, 2)                                 # dropout2
    h = jnp.maximum(linear(h, w3_ref, b3_ref), 0.0)           # fc3 + relu
    h = maybe_drop(h, 0.5, 3)                                 # dropout3
    o_ref[...] = linear(h, wo_ref, bo_ref).astype(o_ref.dtype)  # out (Linear)


def dropout_mlp_diy(x, params, seed, *, train=True, block_rows=256):
    """Fused forward pass of DropoutMLPdiy, tiled over the batch dimension.

    Weights/biases stay VMEM-resident across grid steps; activation tiles of
    TM rows are pipelined (double-buffered) through the grid."""
    w1, b1, w2, b2, w3, b3, wo, bo = params
    B, n_in = x.shape
    n_out = wo.shape[1]

    # Batch tile: big enough to feed the MXU at real batch sizes, clamped for
    # small demo batches (and kept a multiple of 8 for sublane alignment).
    TM = min(block_rows, _round_up(B, 8))
    Bp = _round_up(B, TM)
    if Bp != B:
        x = jnp.pad(x, ((0, Bp - B), (0, 0)))

    operands = (x, w1, b1, w2, b2, w3, b3, wo, bo)

    def resident(shape):
        # Same block every grid step -> stays in VMEM, DMA'd once.
        return pl.BlockSpec(shape, lambda i, seed_ref: (0,) * len(shape))

    out = pl.pallas_call(
        functools.partial(mlp_kernel, train=train),
        out_shape=jax.ShapeDtypeStruct((Bp, n_out), jnp.float32),
        grid_spec=pltpu.PrefetchScalarGridSpec(
            num_scalar_prefetch=1,
            grid=(Bp // TM,),
            in_specs=[pl.BlockSpec((TM, n_in), lambda i, seed_ref: (i, 0))]
                     + [resident(a.shape) for a in operands[1:]],
            out_specs=pl.BlockSpec((TM, n_out), lambda i, seed_ref: (i, 0)),
        ),
        compiler_params=pltpu.CompilerParams(
            dimension_semantics=("parallel",)),   # megacore batch split on v7x
    )(jnp.asarray([seed], dtype=jnp.int32), *operands)
    return out[:B]


def init_linear(key, n_in, n_out):
    """PyTorch-style Linear init: U(-1/sqrt(fan_in), 1/sqrt(fan_in)).
    Weight returned transposed to (in, out) and cast to bf16 for the MXU."""
    kw, kb = jax.random.split(key)
    bound = 1.0 / (n_in ** 0.5)
    w = jax.random.uniform(kw, (n_in, n_out), jnp.float32, -bound, bound)
    b = jax.random.uniform(kb, (1, n_out), jnp.float32, -bound, bound)
    return w.astype(jnp.bfloat16), b


def reference_eval(x, params):
    """Pure-JAX eval-mode (dropout = identity) reference, same bf16/f32 mix."""
    w1, b1, w2, b2, w3, b3, wo, bo = params

    def lin(h, w, b):
        return jnp.dot(h.astype(jnp.bfloat16), w,
                       preferred_element_type=jnp.float32) + b

    h = jnp.maximum(lin(x, w1, b1), 0.0)
    h = jnp.maximum(lin(h, w2, b2), 0.0)
    h = jnp.maximum(lin(h, w3, b3), 0.0)
    return lin(h, wo, bo)


if __name__ == "__main__":
    # Small shapes consistent with the module's constructor (n_in, n_out, n_hidden).
    B, n_in, n_hidden, n_out = 8, 64, 128, 16

    key = jax.random.PRNGKey(0)
    kx, k1, k2, k3, k4 = jax.random.split(key, 5)

    x = jax.random.normal(kx, (B, n_in), jnp.float32)
    w1, b1 = init_linear(k1, n_in, n_hidden)
    w2, b2 = init_linear(k2, n_hidden, n_hidden)
    w3, b3 = init_linear(k3, n_hidden, n_hidden)
    wo, bo = init_linear(k4, n_hidden, n_out)
    params = (w1, b1, w2, b2, w3, b3, wo, bo)

    # Training-mode forward (stochastic dropout, deterministic given the seed).
    y_train = dropout_mlp_diy(x, params, seed=1234, train=True)
    jax.block_until_ready(y_train)
    assert y_train.shape == (B, n_out)
    assert bool(jnp.all(jnp.isfinite(y_train)))

    # Eval-mode forward: dropout is identity -> check against pure-JAX reference.
    y_eval = dropout_mlp_diy(x, params, seed=0, train=False)
    jax.block_until_ready(y_eval)
    ref = reference_eval(x, params)
    assert jnp.allclose(y_eval, ref, atol=1e-2, rtol=1e-2), "mismatch vs reference"

    print("KERNEL_OK")
</pallas_src>

<mosaic_0001>
module attributes {stable_mosaic.version = 11 : i64} {
  func.func @mlp_kernel(%arg0: i32, %arg1: memref<1xi32, #tpu.memory_space<smem>>, %arg2: memref<8x64xf32, #tpu.memory_space<vmem>>, %arg3: memref<64x128xbf16, #tpu.memory_space<vmem>>, %arg4: memref<1x128xf32, #tpu.memory_space<vmem>>, %arg5: memref<128x128xbf16, #tpu.memory_space<vmem>>, %arg6: memref<1x128xf32, #tpu.memory_space<vmem>>, %arg7: memref<128x128xbf16, #tpu.memory_space<vmem>>, %arg8: memref<1x128xf32, #tpu.memory_space<vmem>>, %arg9: memref<128x16xbf16, #tpu.memory_space<vmem>>, %arg10: memref<1x16xf32, #tpu.memory_space<vmem>>, %arg11: memref<8x16xf32, #tpu.memory_space<vmem>>) attributes {dimension_semantics = [#tpu.dimension_semantics<parallel>], iteration_bounds = array<i64: 1>, scalar_prefetch = 1 : i64, scratch_operands = 0 : i64, tpu.core_type = #tpu.core_type<tc>, window_params = [{transform_indices = @transform_0, window_bounds = array<i64: 8, 64>}, {pipeline_mode = #tpu.pipeline_mode<synchronous>, transform_indices = @transform_1, window_bounds = array<i64: 64, 128>}, {pipeline_mode = #tpu.pipeline_mode<synchronous>, transform_indices = @transform_2, window_bounds = array<i64: 1, 128>}, {pipeline_mode = #tpu.pipeline_mode<synchronous>, transform_indices = @transform_3, window_bounds = array<i64: 128, 128>}, {pipeline_mode = #tpu.pipeline_mode<synchronous>, transform_indices = @transform_4, window_bounds = array<i64: 1, 128>}, {pipeline_mode = #tpu.pipeline_mode<synchronous>, transform_indices = @transform_5, window_bounds = array<i64: 128, 128>}, {pipeline_mode = #tpu.pipeline_mode<synchronous>, transform_indices = @transform_6, window_bounds = array<i64: 1, 128>}, {pipeline_mode = #tpu.pipeline_mode<synchronous>, transform_indices = @transform_7, window_bounds = array<i64: 128, 16>}, {pipeline_mode = #tpu.pipeline_mode<synchronous>, transform_indices = @transform_8, window_bounds = array<i64: 1, 16>}, {transform_indices = @transform_9, window_bounds = array<i64: 8, 16>}]} {
    %c0 = arith.constant 0 : index
    %0 = memref.load %arg1[%c0] : memref<1xi32, #tpu.memory_space<smem>>
    %c0_0 = arith.constant 0 : index
    %c0_1 = arith.constant 0 : index
    %1 = vector.load %arg2[%c0_0, %c0_1] : memref<8x64xf32, #tpu.memory_space<vmem>>, vector<8x64xf32>
    %c0_i32 = arith.constant 0 : i32
    %c-1640531527_i32 = arith.constant -1640531527 : i32
    %2 = arith.muli %c0_i32, %c-1640531527_i32 : i32
    %3 = arith.addi %0, %2 : i32
    %c-2048144789_i32 = arith.constant -2048144789 : i32
    %4 = arith.muli %arg0, %c-2048144789_i32 : i32
    %5 = arith.addi %3, %4 : i32
    %6 = tpu.iota {dimensions = array<i32: 0>} : vector<8x64xi32>
    %7 = tpu.iota {dimensions = array<i32: 1>} : vector<8x64xi32>
    %c16777619_i32 = arith.constant 16777619 : i32
    %8 = vector.broadcast %c16777619_i32 : i32 to vector<8x64xi32>
    %9 = arith.muli %6, %8 : vector<8x64xi32>
    %10 = arith.addi %9, %7 : vector<8x64xi32>
    %c-1640531535_i32 = arith.constant -1640531535 : i32
    %11 = arith.muli %5, %c-1640531535_i32 : i32
    %12 = vector.broadcast %11 : i32 to vector<8x64xi32>
    %13 = arith.addi %10, %12 : vector<8x64xi32>
    %c16_i32 = arith.constant 16 : i32
    %14 = vector.broadcast %c16_i32 : i32 to vector<8x64xi32>
    %15 = arith.shrui %13, %14 : vector<8x64xi32>
    %16 = arith.xori %13, %15 : vector<8x64xi32>
    %c2146121005_i32 = arith.constant 2146121005 : i32
    %17 = vector.broadcast %c2146121005_i32 : i32 to vector<8x64xi32>
    %18 = arith.muli %16, %17 : vector<8x64xi32>
    %c15_i32 = arith.constant 15 : i32
    %19 = vector.broadcast %c15_i32 : i32 to vector<8x64xi32>
    %20 = arith.shrui %18, %19 : vector<8x64xi32>
    %21 = arith.xori %18, %20 : vector<8x64xi32>
    %c-2073254261_i32 = arith.constant -2073254261 : i32
    %22 = vector.broadcast %c-2073254261_i32 : i32 to vector<8x64xi32>
    %23 = arith.muli %21, %22 : vector<8x64xi32>
    %c16_i32_2 = arith.constant 16 : i32
    %24 = vector.broadcast %c16_i32_2 : i32 to vector<8x64xi32>
    %25 = arith.shrui %23, %24 : vector<8x64xi32>
    %26 = arith.xori %23, %25 : vector<8x64xi32>
    %c8_i32 = arith.constant 8 : i32
    %27 = vector.broadcast %c8_i32 : i32 to vector<8x64xi32>
    %28 = arith.shrui %26, %27 : vector<8x64xi32>
    %29 = arith.sitofp %28 : vector<8x64xi32> to vector<8x64xf32>
    %cst = arith.constant 5.96046448E-8 : f32
    %30 = vector.broadcast %cst : f32 to vector<8x64xf32>
    %31 = arith.mulf %29, %30 : vector<8x64xf32>
    %cst_3 = arith.constant 8.000000e-01 : f32
    %32 = vector.broadcast %cst_3 : f32 to vector<8x64xf32>
    %33 = arith.cmpf olt, %31, %32 : vector<8x64xf32>
    %cst_4 = arith.constant 1.250000e+00 : f32
    %34 = vector.broadcast %cst_4 : f32 to vector<8x64xf32>
    %35 = arith.mulf %1, %34 : vector<8x64xf32>
    %cst_5 = arith.constant 0.000000e+00 : f32
    %36 = vector.broadcast %cst_5 : f32 to vector<8x64xf32>
    %37 = arith.select %33, %35, %36 : vector<8x64xi1>, vector<8x64xf32>
    %38 = arith.truncf %37 : vector<8x64xf32> to vector<8x64xbf16>
    %c0_6 = arith.constant 0 : index
    %c0_7 = arith.constant 0 : index
    %39 = vector.load %arg3[%c0_6, %c0_7] : memref<64x128xbf16, #tpu.memory_space<vmem>>, vector<64x128xbf16>
    %cst_8 = arith.constant dense<0.000000e+00> : vector<8x128xf32>
    %40 = tpu.matmul %38, %39, %cst_8 {dimension_numbers = #tpu.dot_dimension_numbers<[1], [0], [0], [1], [0, 0, 1, 1], [], []>} : vector<8x64xbf16>, vector<64x128xbf16>, vector<8x128xf32> -> vector<8x128xf32>
    %c0_9 = arith.constant 0 : index
    %c0_10 = arith.constant 0 : index
    %41 = vector.load %arg4[%c0_9, %c0_10] : memref<1x128xf32, #tpu.memory_space<vmem>>, vector<1x128xf32>
    %42 = vector.broadcast %41 : vector<1x128xf32> to vector<8x128xf32>
    %43 = arith.addf %40, %42 : vector<8x128xf32>
    %cst_11 = arith.constant 0.000000e+00 : f32
    %44 = vector.broadcast %cst_11 : f32 to vector<8x128xf32>
    %45 = arith.maximumf %43, %44 : vector<8x128xf32>
    %c1_i32 = arith.constant 1 : i32
    %c-1640531527_i32_12 = arith.constant -1640531527 : i32
    %46 = arith.muli %c1_i32, %c-1640531527_i32_12 : i32
    %47 = arith.addi %0, %46 : i32
    %c-2048144789_i32_13 = arith.constant -2048144789 : i32
    %48 = arith.muli %arg0, %c-2048144789_i32_13 : i32
    %49 = arith.addi %47, %48 : i32
    %50 = tpu.iota {dimensions = array<i32: 0>} : vector<8x128xi32>
    %51 = tpu.iota {dimensions = array<i32: 1>} : vector<8x128xi32>
    %c16777619_i32_14 = arith.constant 16777619 : i32
    %52 = vector.broadcast %c16777619_i32_14 : i32 to vector<8x128xi32>
    %53 = arith.muli %50, %52 : vector<8x128xi32>
    %54 = arith.addi %53, %51 : vector<8x128xi32>
    %c-1640531535_i32_15 = arith.constant -1640531535 : i32
    %55 = arith.muli %49, %c-1640531535_i32_15 : i32
    %56 = vector.broadcast %55 : i32 to vector<8x128xi32>
    %57 = arith.addi %54, %56 : vector<8x128xi32>
    %c16_i32_16 = arith.constant 16 : i32
    %58 = vector.broadcast %c16_i32_16 : i32 to vector<8x128xi32>
    %59 = arith.shrui %57, %58 : vector<8x128xi32>
    %60 = arith.xori %57, %59 : vector<8x128xi32>
    %c2146121005_i32_17 = arith.constant 2146121005 : i32
    %61 = vector.broadcast %c2146121005_i32_17 : i32 to vector<8x128xi32>
    %62 = arith.muli %60, %61 : vector<8x128xi32>
    %c15_i32_18 = arith.constant 15 : i32
    %63 = vector.broadcast %c15_i32_18 : i32 to vector<8x128xi32>
    %64 = arith.shrui %62, %63 : vector<8x128xi32>
    %65 = arith.xori %62, %64 : vector<8x128xi32>
    %c-2073254261_i32_19 = arith.constant -2073254261 : i32
    %66 = vector.broadcast %c-2073254261_i32_19 : i32 to vector<8x128xi32>
    %67 = arith.muli %65, %66 : vector<8x128xi32>
    %c16_i32_20 = arith.constant 16 : i32
    %68 = vector.broadcast %c16_i32_20 : i32 to vector<8x128xi32>
    %69 = arith.shrui %67, %68 : vector<8x128xi32>
    %70 = arith.xori %67, %69 : vector<8x128xi32>
    %c8_i32_21 = arith.constant 8 : i32
    %71 = vector.broadcast %c8_i32_21 : i32 to vector<8x128xi32>
    %72 = arith.shrui %70, %71 : vector<8x128xi32>
    %73 = arith.sitofp %72 : vector<8x128xi32> to vector<8x128xf32>
    %cst_22 = arith.constant 5.96046448E-8 : f32
    %74 = vector.broadcast %cst_22 : f32 to vector<8x128xf32>
    %75 = arith.mulf %73, %74 : vector<8x128xf32>
    %cst_23 = arith.constant 5.000000e-01 : f32
    %76 = vector.broadcast %cst_23 : f32 to vector<8x128xf32>
    %77 = arith.cmpf olt, %75, %76 : vector<8x128xf32>
    %cst_24 = arith.constant 2.000000e+00 : f32
    %78 = vector.broadcast %cst_24 : f32 to vector<8x128xf32>
    %79 = arith.mulf %45, %78 : vector<8x128xf32>
    %cst_25 = arith.constant 0.000000e+00 : f32
    %80 = vector.broadcast %cst_25 : f32 to vector<8x128xf32>
    %81 = arith.select %77, %79, %80 : vector<8x128xi1>, vector<8x128xf32>
    %82 = arith.truncf %81 : vector<8x128xf32> to vector<8x128xbf16>
    %c0_26 = arith.constant 0 : index
    %c0_27 = arith.constant 0 : index
    %83 = vector.load %arg5[%c0_26, %c0_27] : memref<128x128xbf16, #tpu.memory_space<vmem>>, vector<128x128xbf16>
    %cst_28 = arith.constant dense<0.000000e+00> : vector<8x128xf32>
    %84 = tpu.matmul %82, %83, %cst_28 {dimension_numbers = #tpu.dot_dimension_numbers<[1], [0], [0], [1], [0, 0, 1, 1], [], []>} : vector<8x128xbf16>, vector<128x128xbf16>, vector<8x128xf32> -> vector<8x128xf32>
    %c0_29 = arith.constant 0 : index
    %c0_30 = arith.constant 0 : index
    %85 = vector.load %arg6[%c0_29, %c0_30] : memref<1x128xf32, #tpu.memory_space<vmem>>, vector<1x128xf32>
    %86 = vector.broadcast %85 : vector<1x128xf32> to vector<8x128xf32>
    %87 = arith.addf %84, %86 : vector<8x128xf32>
    %cst_31 = arith.constant 0.000000e+00 : f32
    %88 = vector.broadcast %cst_31 : f32 to vector<8x128xf32>
    %89 = arith.maximumf %87, %88 : vector<8x128xf32>
    %c2_i32 = arith.constant 2 : i32
    %c-1640531527_i32_32 = arith.constant -1640531527 : i32
    %90 = arith.muli %c2_i32, %c-1640531527_i32_32 : i32
    %91 = arith.addi %0, %90 : i32
    %c-2048144789_i32_33 = arith.constant -2048144789 : i32
    %92 = arith.muli %arg0, %c-2048144789_i32_33 : i32
    %93 = arith.addi %91, %92 : i32
    %94 = tpu.iota {dimensions = array<i32: 0>} : vector<8x128xi32>
    %95 = tpu.iota {dimensions = array<i32: 1>} : vector<8x128xi32>
    %c16777619_i32_34 = arith.constant 16777619 : i32
    %96 = vector.broadcast %c16777619_i32_34 : i32 to vector<8x128xi32>
    %97 = arith.muli %94, %96 : vector<8x128xi32>
    %98 = arith.addi %97, %95 : vector<8x128xi32>
    %c-1640531535_i32_35 = arith.constant -1640531535 : i32
    %99 = arith.muli %93, %c-1640531535_i32_35 : i32
    %100 = vector.broadcast %99 : i32 to vector<8x128xi32>
    %101 = arith.addi %98, %100 : vector<8x128xi32>
    %c16_i32_36 = arith.constant 16 : i32
    %102 = vector.broadcast %c16_i32_36 : i32 to vector<8x128xi32>
    %103 = arith.shrui %101, %102 : vector<8x128xi32>
    %104 = arith.xori %101, %103 : vector<8x128xi32>
    %c2146121005_i32_37 = arith.constant 2146121005 : i32
    %105 = vector.broadcast %c2146121005_i32_37 : i32 to vector<8x128xi32>
    %106 = arith.muli %104, %105 : vector<8x128xi32>
    %c15_i32_38 = arith.constant 15 : i32
    %107 = vector.broadcast %c15_i32_38 : i32 to vector<8x128xi32>
    %108 = arith.shrui %106, %107 : vector<8x128xi32>
    %109 = arith.xori %106, %108 : vector<8x128xi32>
    %c-2073254261_i32_39 = arith.constant -2073254261 : i32
    %110 = vector.broadcast %c-2073254261_i32_39 : i32 to vector<8x128xi32>
    %111 = arith.muli %109, %110 : vector<8x128xi32>
    %c16_i32_40 = arith.constant 16 : i32
    %112 = vector.broadcast %c16_i32_40 : i32 to vector<8x128xi32>
    %113 = arith.shrui %111, %112 : vector<8x128xi32>
    %114 = arith.xori %111, %113 : vector<8x128xi32>
    %c8_i32_41 = arith.constant 8 : i32
    %115 = vector.broadcast %c8_i32_41 : i32 to vector<8x128xi32>
    %116 = arith.shrui %114, %115 : vector<8x128xi32>
    %117 = arith.sitofp %116 : vector<8x128xi32> to vector<8x128xf32>
    %cst_42 = arith.constant 5.96046448E-8 : f32
    %118 = vector.broadcast %cst_42 : f32 to vector<8x128xf32>
    %119 = arith.mulf %117, %118 : vector<8x128xf32>
    %cst_43 = arith.constant 5.000000e-01 : f32
    %120 = vector.broadcast %cst_43 : f32 to vector<8x128xf32>
    %121 = arith.cmpf olt, %119, %120 : vector<8x128xf32>
    %cst_44 = arith.constant 2.000000e+00 : f32
    %122 = vector.broadcast %cst_44 : f32 to vector<8x128xf32>
    %123 = arith.mulf %89, %122 : vector<8x128xf32>
    %cst_45 = arith.constant 0.000000e+00 : f32
    %124 = vector.broadcast %cst_45 : f32 to vector<8x128xf32>
    %125 = arith.select %121, %123, %124 : vector<8x128xi1>, vector<8x128xf32>
    %126 = arith.truncf %125 : vector<8x128xf32> to vector<8x128xbf16>
    %c0_46 = arith.constant 0 : index
    %c0_47 = arith.constant 0 : index
    %127 = vector.load %arg7[%c0_46, %c0_47] : memref<128x128xbf16, #tpu.memory_space<vmem>>, vector<128x128xbf16>
    %cst_48 = arith.constant dense<0.000000e+00> : vector<8x128xf32>
    %128 = tpu.matmul %126, %127, %cst_48 {dimension_numbers = #tpu.dot_dimension_numbers<[1], [0], [0], [1], [0, 0, 1, 1], [], []>} : vector<8x128xbf16>, vector<128x128xbf16>, vector<8x128xf32> -> vector<8x128xf32>
    %c0_49 = arith.constant 0 : index
    %c0_50 = arith.constant 0 : index
    %129 = vector.load %arg8[%c0_49, %c0_50] : memref<1x128xf32, #tpu.memory_space<vmem>>, vector<1x128xf32>
    %130 = vector.broadcast %129 : vector<1x128xf32> to vector<8x128xf32>
    %131 = arith.addf %128, %130 : vector<8x128xf32>
    %cst_51 = arith.constant 0.000000e+00 : f32
    %132 = vector.broadcast %cst_51 : f32 to vector<8x128xf32>
    %133 = arith.maximumf %131, %132 : vector<8x128xf32>
    %c3_i32 = arith.constant 3 : i32
    %c-1640531527_i32_52 = arith.constant -1640531527 : i32
    %134 = arith.muli %c3_i32, %c-1640531527_i32_52 : i32
    %135 = arith.addi %0, %134 : i32
    %c-2048144789_i32_53 = arith.constant -2048144789 : i32
    %136 = arith.muli %arg0, %c-2048144789_i32_53 : i32
    %137 = arith.addi %135, %136 : i32
    %138 = tpu.iota {dimensions = array<i32: 0>} : vector<8x128xi32>
    %139 = tpu.iota {dimensions = array<i32: 1>} : vector<8x128xi32>
    %c16777619_i32_54 = arith.constant 16777619 : i32
    %140 = vector.broadcast %c16777619_i32_54 : i32 to vector<8x128xi32>
    %141 = arith.muli %138, %140 : vector<8x128xi32>
    %142 = arith.addi %141, %139 : vector<8x128xi32>
    %c-1640531535_i32_55 = arith.constant -1640531535 : i32
    %143 = arith.muli %137, %c-1640531535_i32_55 : i32
    %144 = vector.broadcast %143 : i32 to vector<8x128xi32>
    %145 = arith.addi %142, %144 : vector<8x128xi32>
    %c16_i32_56 = arith.constant 16 : i32
    %146 = vector.broadcast %c16_i32_56 : i32 to vector<8x128xi32>
    %147 = arith.shrui %145, %146 : vector<8x128xi32>
    %148 = arith.xori %145, %147 : vector<8x128xi32>
    %c2146121005_i32_57 = arith.constant 2146121005 : i32
    %149 = vector.broadcast %c2146121005_i32_57 : i32 to vector<8x128xi32>
    %150 = arith.muli %148, %149 : vector<8x128xi32>
    %c15_i32_58 = arith.constant 15 : i32
    %151 = vector.broadcast %c15_i32_58 : i32 to vector<8x128xi32>
    %152 = arith.shrui %150, %151 : vector<8x128xi32>
    %153 = arith.xori %150, %152 : vector<8x128xi32>
    %c-2073254261_i32_59 = arith.constant -2073254261 : i32
    %154 = vector.broadcast %c-2073254261_i32_59 : i32 to vector<8x128xi32>
    %155 = arith.muli %153, %154 : vector<8x128xi32>
    %c16_i32_60 = arith.constant 16 : i32
    %156 = vector.broadcast %c16_i32_60 : i32 to vector<8x128xi32>
    %157 = arith.shrui %155, %156 : vector<8x128xi32>
    %158 = arith.xori %155, %157 : vector<8x128xi32>
    %c8_i32_61 = arith.constant 8 : i32
    %159 = vector.broadcast %c8_i32_61 : i32 to vector<8x128xi32>
    %160 = arith.shrui %158, %159 : vector<8x128xi32>
    %161 = arith.sitofp %160 : vector<8x128xi32> to vector<8x128xf32>
    %cst_62 = arith.constant 5.96046448E-8 : f32
    %162 = vector.broadcast %cst_62 : f32 to vector<8x128xf32>
    %163 = arith.mulf %161, %162 : vector<8x128xf32>
    %cst_63 = arith.constant 5.000000e-01 : f32
    %164 = vector.broadcast %cst_63 : f32 to vector<8x128xf32>
    %165 = arith.cmpf olt, %163, %164 : vector<8x128xf32>
    %cst_64 = arith.constant 2.000000e+00 : f32
    %166 = vector.broadcast %cst_64 : f32 to vector<8x128xf32>
    %167 = arith.mulf %133, %166 : vector<8x128xf32>
    %cst_65 = arith.constant 0.000000e+00 : f32
    %168 = vector.broadcast %cst_65 : f32 to vector<8x128xf32>
    %169 = arith.select %165, %167, %168 : vector<8x128xi1>, vector<8x128xf32>
    %170 = arith.truncf %169 : vector<8x128xf32> to vector<8x128xbf16>
    %c0_66 = arith.constant 0 : index
    %c0_67 = arith.constant 0 : index
    %171 = vector.load %arg9[%c0_66, %c0_67] : memref<128x16xbf16, #tpu.memory_space<vmem>>, vector<128x16xbf16>
    %cst_68 = arith.constant dense<0.000000e+00> : vector<8x16xf32>
    %172 = tpu.matmul %170, %171, %cst_68 {dimension_numbers = #tpu.dot_dimension_numbers<[1], [0], [0], [1], [0, 0, 1, 1], [], []>} : vector<8x128xbf16>, vector<128x16xbf16>, vector<8x16xf32> -> vector<8x16xf32>
    %c0_69 = arith.constant 0 : index
    %c0_70 = arith.constant 0 : index
    %173 = vector.load %arg10[%c0_69, %c0_70] : memref<1x16xf32, #tpu.memory_space<vmem>>, vector<1x16xf32>
    %174 = vector.broadcast %173 : vector<1x16xf32> to vector<8x16xf32>
    %175 = arith.addf %172, %174 : vector<8x16xf32>
    %c0_71 = arith.constant 0 : index
    %c0_72 = arith.constant 0 : index
    %176 = vector.load %arg11[%c0_71, %c0_72] : memref<8x16xf32, #tpu.memory_space<vmem>>, vector<8x16xf32>
    tpu.vector_store %arg11[%c0_71, %c0_72], %175 {strides = array<i32>} : memref<8x16xf32, #tpu.memory_space<vmem>>, vector<8x16xf32>,
    return
  }
  func.func @transform_0(%arg0: i32, %arg1: memref<1xi32, #tpu.memory_space<smem>>) -> (i32, i32) {
    %c0_i32 = arith.constant 0 : i32
    %c0_i32_0 = arith.constant 0 : i32
    return %arg0, %c0_i32 : i32, i32
  }
  func.func @transform_1(%arg0: i32, %arg1: memref<1xi32, #tpu.memory_space<smem>>) -> (i32, i32) {
    %c0_i32 = arith.constant 0 : i32
    %c0_i32_0 = arith.constant 0 : i32
    %c0_i32_1 = arith.constant 0 : i32
    return %c0_i32, %c0_i32_0 : i32, i32
  }
  func.func @transform_2(%arg0: i32, %arg1: memref<1xi32, #tpu.memory_space<smem>>) -> (i32, i32) {
    %c0_i32 = arith.constant 0 : i32
    %c0_i32_0 = arith.constant 0 : i32
    %c0_i32_1 = arith.constant 0 : i32
    return %c0_i32, %c0_i32_0 : i32, i32
  }
  func.func @transform_3(%arg0: i32, %arg1: memref<1xi32, #tpu.memory_space<smem>>) -> (i32, i32) {
    %c0_i32 = arith.constant 0 : i32
    %c0_i32_0 = arith.constant 0 : i32
    %c0_i32_1 = arith.constant 0 : i32
    return %c0_i32, %c0_i32_0 : i32, i32
  }
  func.func @transform_4(%arg0: i32, %arg1: memref<1xi32, #tpu.memory_space<smem>>) -> (i32, i32) {
    %c0_i32 = arith.constant 0 : i32
    %c0_i32_0 = arith.constant 0 : i32
    %c0_i32_1 = arith.constant 0 : i32
    return %c0_i32, %c0_i32_0 : i32, i32
  }
  func.func @transform_5(%arg0: i32, %arg1: memref<1xi32, #tpu.memory_space<smem>>) -> (i32, i32) {
    %c0_i32 = arith.constant 0 : i32
    %c0_i32_0 = arith.constant 0 : i32
    %c0_i32_1 = arith.constant 0 : i32
    return %c0_i32, %c0_i32_0 : i32, i32
  }
  func.func @transform_6(%arg0: i32, %arg1: memref<1xi32, #tpu.memory_space<smem>>) -> (i32, i32) {
    %c0_i32 = arith.constant 0 : i32
    %c0_i32_0 = arith.constant 0 : i32
    %c0_i32_1 = arith.constant 0 : i32
    return %c0_i32, %c0_i32_0 : i32, i32
  }
  func.func @transform_7(%arg0: i32, %arg1: memref<1xi32, #tpu.memory_space<smem>>) -> (i32, i32) {
    %c0_i32 = arith.constant 0 : i32
    %c0_i32_0 = arith.constant 0 : i32
    %c0_i32_1 = arith.constant 0 : i32
    return %c0_i32, %c0_i32_0 : i32, i32
  }
  func.func @transform_8(%arg0: i32, %arg1: memref<1xi32, #tpu.memory_space<smem>>) -> (i32, i32) {
    %c0_i32 = arith.constant 0 : i32
    %c0_i32_0 = arith.constant 0 : i32
    %c0_i32_1 = arith.constant 0 : i32
    return %c0_i32, %c0_i32_0 : i32, i32
  }
  func.func @transform_9(%arg0: i32, %arg1: memref<1xi32, #tpu.memory_space<smem>>) -> (i32, i32) {
    %c0_i32 = arith.constant 0 : i32
    %c0_i32_0 = arith.constant 0 : i32
    return %arg0, %c0_i32 : i32, i32
  }
}

</mosaic_0001>

<llo_original>
// kernel: tpu_custom_call.1
$region0: #{tpu_custom_call.1}
  #allocation0 [shape = 'u32[]', space=smem, size = 0x4, offset = 0x4, fixed_abs, tag = 'smem constant byte address 0x4 - core index']
  #allocation1 [shape = 'u32[144,128]{1,0:T(1,128)}', space=vmem, size = 0x12000, scoped, tag = 'internal scratch']
  #allocation2 [shape = 's32[1]{0}', space=sflag, size = 0x4, scoped, tag = 'scoped memory for tpu_custom_call.1']
  #allocation3 [shape = 's32[1]{0:T(128)S(6)}', space=smem, size = 0x200, scoped, tag = 'prefetched SMEM operand 0']
  %s0 = inlined_call_operand.<no memory space> [shape: s32[1], index: 0, kind: input, shape index: {}]
  %s1 = inlined_call_operand.vmem [shape: f32[8,64], index: 1, kind: input, shape index: {}]
  %s2 = inlined_call_operand.hbm [shape: bf16[64,128], index: 2, kind: input, shape index: {}]
  %s3 = inlined_call_operand.vmem [shape: f32[1,128], index: 3, kind: input, shape index: {}]
  %s4 = inlined_call_operand.vmem [shape: bf16[128,128], index: 4, kind: input, shape index: {}]
  %s5 = inlined_call_operand.vmem [shape: f32[1,128], index: 5, kind: input, shape index: {}]
  %s6 = inlined_call_operand.hbm [shape: bf16[128,128], index: 6, kind: input, shape index: {}]
  %s7 = inlined_call_operand.vmem [shape: f32[1,128], index: 7, kind: input, shape index: {}]
  %s8 = inlined_call_operand.vmem [shape: bf16[128,16], index: 8, kind: input, shape index: {}]
  %s9 = inlined_call_operand.vmem [shape: f32[1,16], index: 9, kind: input, shape index: {}]
  %s10 = inlined_call_operand.hbm [shape: f32[8,16], index: 10, kind: output, shape index: {}]
  %s11 = sld [smem:[#allocation0]]
  $region54: #{tpu_custom_call.1} parent=0
    _
  %s13 = ssub.s32 1, %s11
  %s14 = scalar_select 0, %s13, %s11
  %15 = sst [smem:[#allocation3]] %s0
  $region1: #{tpu_custom_call.1} parent=0
    #allocation4 [shape = 'u8[16384]{0}', space=vmem, size = 0x4000, scoped, tag = 'input window, operand 2, single buffered']
    #allocation5 [shape = 's32[1]{0}', space=sflag, size = 0x4, scoped, tag = 'scoped memory for tpu_custom_call.1']
    #allocation6 [shape = 's32[1]{0}', space=sflag, size = 0x4, scoped, tag = 'scoped memory for tpu_custom_call.1']
    #allocation7 [shape = 'u8[32768]{0}', space=vmem, size = 0x8000, scoped, tag = 'input window, operand 6, single buffered']
    #allocation8 [shape = 's32[1]{0}', space=sflag, size = 0x4, scoped, tag = 'scoped memory for tpu_custom_call.1']
    #allocation9 [shape = 'u8[4096]{0}', space=vmem, size = 0x1000, scoped, tag = 'output window, operand 0, single buffered']
    %16 = vsyncpa [#allocation5], 0
    %17 = vsyncpa [#allocation8], 0
    %18 = vsyncpa [#allocation6], 0
    // Predicated region
    $region2: #{tpu_custom_call.1} parent=1 // pred_check
      _
    $region3: #{tpu_custom_call.1} parent=1 // pred_check_branch
      %20 = sbr.rel (0) target = $region5
    $region4: #{tpu_custom_call.1} parent=1 // pred_region
      _
    $region5: #{tpu_custom_call.1} parent=1 // pred_fallthru
      _
    // Predicated region
    $region6: #{tpu_custom_call.1} parent=1 // pred_check
      _
    $region7: #{tpu_custom_call.1} parent=1 // pred_check_branch
      %22 = sbr.rel (0) target = $region9
    $region8: #{tpu_custom_call.1} parent=1 // pred_region
      %s24 = ssub.s32 512, 512
      %25 = vsyncadd [#allocation5], %s24
      %s26 = sshll.u32 [#allocation4], 4
      %s27 = int_to_ptr.vmem [resolvable:$true] %s26
      %32 = dma.hbm_to_vmem [thread:$0]  %s2, 512, %s27, [#allocation5], 64, 64, 4
    $region9: #{tpu_custom_call.1} parent=1 // pred_fallthru
      _
    // Predicated region
    $region10: #{tpu_custom_call.1} parent=1 // pred_check
      _
    $region11: #{tpu_custom_call.1} parent=1 // pred_check_branch
      %34 = sbr.rel (0) target = $region13
    $region12: #{tpu_custom_call.1} parent=1 // pred_region
      _
    $region13: #{tpu_custom_call.1} parent=1 // pred_fallthru
      _
    // Predicated region
    $region14: #{tpu_custom_call.1} parent=1 // pred_check
      _
    $region15: #{tpu_custom_call.1} parent=1 // pred_check_branch
      %36 = sbr.rel (0) target = $region17
    $region16: #{tpu_custom_call.1} parent=1 // pred_region
      _
    $region17: #{tpu_custom_call.1} parent=1 // pred_fallthru
      _
    // Predicated region
    $region18: #{tpu_custom_call.1} parent=1 // pred_check
      _
    $region19: #{tpu_custom_call.1} parent=1 // pred_check_branch
      %38 = sbr.rel (0) target = $region21
    $region20: #{tpu_custom_call.1} parent=1 // pred_region
      _
    $region21: #{tpu_custom_call.1} parent=1 // pred_fallthru
      _
    // Predicated region
    $region22: #{tpu_custom_call.1} parent=1 // pred_check
      _
    $region23: #{tpu_custom_call.1} parent=1 // pred_check_branch
      %40 = sbr.rel (0) target = $region25
    $region24: #{tpu_custom_call.1} parent=1 // pred_region
      %s42 = ssub.s32 1024, 1024
      %43 = vsyncadd [#allocation8], %s42
      %s44 = sshll.u32 [#allocation7], 4
      %s45 = int_to_ptr.vmem [resolvable:$true] %s44
      %50 = dma.hbm_to_vmem [thread:$0]  %s6, 1024, %s45, [#allocation8], 64, 64, 4
    $region25: #{tpu_custom_call.1} parent=1 // pred_fallthru
      _
    // Predicated region
    $region26: #{tpu_custom_call.1} parent=1 // pred_check
      _
    $region27: #{tpu_custom_call.1} parent=1 // pred_check_branch
      %52 = sbr.rel (0) target = $region29
    $region28: #{tpu_custom_call.1} parent=1 // pred_region
      _
    $region29: #{tpu_custom_call.1} parent=1 // pred_fallthru
      _
    // Predicated region
    $region30: #{tpu_custom_call.1} parent=1 // pred_check
      _
    $region31: #{tpu_custom_call.1} parent=1 // pred_check_branch
      %54 = sbr.rel (0) target = $region33
    $region32: #{tpu_custom_call.1} parent=1 // pred_region
      _
    $region33: #{tpu_custom_call.1} parent=1 // pred_fallthru
      _
    // Predicated region
    $region34: #{tpu_custom_call.1} parent=1 // pred_check
      _
    $region35: #{tpu_custom_call.1} parent=1 // pred_check_branch
      %56 = sbr.rel (0) target = $region37
    $region36: #{tpu_custom_call.1} parent=1 // pred_region
      _
    $region37: #{tpu_custom_call.1} parent=1 // pred_fallthru
      _
    // Predicated region
    $region38: #{tpu_custom_call.1} parent=1 // pred_check
      _
    $region39: #{tpu_custom_call.1} parent=1 // pred_check_branch
      %58 = sbr.rel (0) target = $region41
    $region40: #{tpu_custom_call.1} parent=1 // pred_region
      %59 = dma.done [#allocation5], 512
    $region41: #{tpu_custom_call.1} parent=1 // pred_fallthru
      _
    // Predicated region
    $region42: #{tpu_custom_call.1} parent=1 // pred_check
      _
    $region43: #{tpu_custom_call.1} parent=1 // pred_check_branch
      %61 = sbr.rel (0) target = $region45
    $region44: #{tpu_custom_call.1} parent=1 // pred_region
      %62 = dma.done [#allocation8], 1024
    $region45: #{tpu_custom_call.1} parent=1 // pred_fallthru
      _
    %s64 = sld [smem:[#allocation3]]
    %v65 = vld [vmem:[%s1] sm:$0xff]
    %s66 = smul.u32 0, 2246822507
    %s67 = sadd.s32 %s64, %s66
    %v68 = vlaneseq
    %v69 = vshrl.u32 %v68, 7
    %v70 = vlaneseq
    %v71 = vand.u32 %v70, 127
    %v72 = vmul.u32 %v69, 16777619
    %v73 = vadd.s32 %v72, %v71
    %s74 = smul.u32 %s67, 2654435761
    %v75 = vstv %s74
    %v76 = vadd.s32 %v73, %v75
    %v77 = vshrl.u32 %v76, 16
    %v78 = vxor.u32 %v76, %v77
    %v79 = vmul.u32 %v78, 2146121005
    %v80 = vshrl.u32 %v79, 15
    %v81 = vxor.u32 %v79, %v80
    %v82 = vmul.u32 %v81, 2221713035
    %v83 = vshrl.u32 %v82, 16
    %v84 = vxor.u32 %v82, %v83
    %v85 = vshrl.u32 %v84, 8
    %v86 = vcvt.s32.f32 %v85
    %v87 = vmul.f32 %v86, 5.9604645e-08
    %vm88 = vcmp.lt.f32.partialorder %v87, 0.8
    %v89 = vmul.f32 %v65, 1.25
    %v90 = vsel %vm88, %v89, 0.0
    %v91 = vpack.c.bf16 %v90, %v90
    %v92 = vld [vmem:[#allocation4] sm:$0xf]
    %v93 = vld [vmem:[#allocation4 + $0x4] sm:$0xf]
    %v94 = vld [vmem:[#allocation4 + $0x8] sm:$0xf]
    %v95 = vld [vmem:[#allocation4 + $0xc] sm:$0xf]
    %v96 = vld [vmem:[#allocation4 + $0x10] sm:$0xf]
    %v97 = vld [vmem:[#allocation4 + $0x14] sm:$0xf]
    %v98 = vld [vmem:[#allocation4 + $0x18] sm:$0xf]
    %v99 = vld [vmem:[#allocation4 + $0x1c] sm:$0xf]
    %v100 = vld [vmem:[%s3] sm:$0x1]
    %v102 = vlaneseq
    %v103 = vshrl.u32 %v102, 7
    %v104 = vsub.s32 0, %v103
    %v105 = vrot.slane %v100, %v104
    %v115 = vunpack.c.l.b16 %v92
    %v116 = vunpack.c.l.b16 %v93
    %v117 = vunpack.c.l.b16 %v94
    %v118 = vunpack.c.l.b16 %v95
    %v119 = vunpack.c.l.b16 %v96
    %v120 = vunpack.c.l.b16 %v97
    %v121 = vunpack.c.l.b16 %v98
    %v122 = vunpack.c.l.b16 %v99
    %v123 = vpack.c.b16 %v116, %v115
    %v124 = vpack.c.b16 %v118, %v117
    %v125 = vpack.c.b16 %v120, %v119
    %v126 = vpack.c.b16 %v122, %v121
    %vm131 = vcmask 523264
    %v133 = vsel %vm131, %v91, 0
    %135 = vmatprep.subr.bf16.mxu0 0
    %136 = vmatpush1.bf16.msra.mxu0 %v123
    %137 = vmatprep.subr.bf16.mxu0 0
    %138 = vmatpush1.bf16.msra.mxu0 %v124
    %139 = vmatprep.subr.bf16.mxu0 0
    %140 = vmatpush1.bf16.msra.mxu0 %v125
    %141 = vmatprep.subr.bf16.mxu0 0
    %142 = vmatpush1.bf16.msra.mxu0 %v126
    %143 = vmatprep.subr.bf16.mxu0 0
    %144 = vmatpush1.bf16.msra.mxu0 0
    %145 = vmatprep.subr.bf16.mxu0 0
    %146 = vmatpush1.bf16.msra.mxu0 0
    %147 = vmatprep.subr.bf16.mxu0 0
    %148 = vmatpush1.bf16.msra.mxu0 0
    %149 = vmatprep.subr.bf16.mxu0 0
    %150 = vmatpush1.bf16.msra.mxu0 0
    %151 = vmatprep.subr.bf16.mxu0 0
    %152 = vmatpush1.bf16.msra.mxu0 0
    %153 = vmatprep.subr.bf16.mxu0 0
    %154 = vmatpush1.bf16.msra.mxu0 0
    %155 = vmatprep.subr.bf16.mxu0 0
    %156 = vmatpush1.bf16.msra.mxu0 0
    %157 = vmatprep.subr.bf16.mxu0 0
    %158 = vmatpush1.bf16.msra.mxu0 0
    %159 = vmatprep.subr.bf16.mxu0 0
    %160 = vmatpush1.bf16.msra.mxu0 0
    %161 = vmatprep.subr.bf16.mxu0 0
    %162 = vmatpush1.bf16.msra.mxu0 0
    %163 = vmatprep.subr.bf16.mxu0 0
    %164 = vmatpush1.bf16.msra.mxu0 0
    %165 = vmatprep.subr.bf16.mxu0 0
    %166 = vmatpush1.bf16.msra.mxu0 0
    %167 = vmatprep.mubr.bf16.mxu0 0
    %168 = vmatmul.mubr.bf16.gmra.mrb[0].mxu0 %v133
    %v169 = vpop.f32.mrb[0].mxu0
    %v170 = vadd.f32 %v105, %v169
    %v171 = vpop.f32.mrb[0].mxu0
    %v172 = vpop.f32.mrb[0].mxu0
    %v173 = vpop.f32.mrb[0].mxu0
    %174 = vdwg.mxu0
    %v175 = vmax.f32 %v170, 0.0
    %s176 = sadd.s32 %s64, 2654435769
    %s177 = sadd.s32 %s176, %s66
    %s178 = smul.u32 %s177, 2654435761
    %v179 = vstv %s178
    %v180 = vadd.s32 %v73, %v179
    %v181 = vshrl.u32 %v180, 16
    %v182 = vxor.u32 %v180, %v181
    %v183 = vmul.u32 %v182, 2146121005
    %v184 = vshrl.u32 %v183, 15
    %v185 = vxor.u32 %v183, %v184
    %v186 = vmul.u32 %v185, 2221713035
    %v187 = vshrl.u32 %v186, 16
    %v188 = vxor.u32 %v186, %v187
    %v189 = vshrl.u32 %v188, 8
    %v190 = vcvt.s32.f32 %v189
    %v191 = vmul.f32 %v190, 5.9604645e-08
    %vm192 = vcmp.lt.f32.partialorder %v191, 0.5
    %v193 = vmul.f32 %v175, 2.0
    %v194 = vsel %vm192, %v193, 0.0
    %v195 = vpack.c.bf16 %v194, %v194
    %v196 = vld [vmem:[%s4] sm:$0xf]
    %v197 = vld [vmem:[%s4 + $0x4] sm:$0xf]
    %v198 = vld [vmem:[%s4 + $0x8] sm:$0xf]
    %v199 = vld [vmem:[%s4 + $0xc] sm:$0xf]
    %v200 = vld [vmem:[%s4 + $0x10] sm:$0xf]
    %v201 = vld [vmem:[%s4 + $0x14] sm:$0xf]
    %v202 = vld [vmem:[%s4 + $0x18] sm:$0xf]
    %v203 = vld [vmem:[%s4 + $0x1c] sm:$0xf]
    %v204 = vld [vmem:[%s4 + $0x20] sm:$0xf]
    %v205 = vld [vmem:[%s4 + $0x24] sm:$0xf]
    %v206 = vld [vmem:[%s4 + $0x28] sm:$0xf]
    %v207 = vld [vmem:[%s4 + $0x2c] sm:$0xf]
    %v208 = vld [vmem:[%s4 + $0x30] sm:$0xf]
    %v209 = vld [vmem:[%s4 + $0x34] sm:$0xf]
    %v210 = vld [vmem:[%s4 + $0x38] sm:$0xf]
    %v211 = vld [vmem:[%s4 + $0x3c] sm:$0xf]
    %v212 = vld [vmem:[%s5] sm:$0x1]
    %v214 = vlaneseq
    %v215 = vshrl.u32 %v214, 7
    %v216 = vsub.s32 0, %v215
    %v217 = vrot.slane %v212, %v216
    %v235 = vunpack.c.l.b16 %v196
    %v236 = vunpack.c.l.b16 %v197
    %v237 = vunpack.c.l.b16 %v198
    %v238 = vunpack.c.l.b16 %v199
    %v239 = vunpack.c.l.b16 %v200
    %v240 = vunpack.c.l.b16 %v201
    %v241 = vunpack.c.l.b16 %v202
    %v242 = vunpack.c.l.b16 %v203
    %v243 = vunpack.c.l.b16 %v204
    %v244 = vunpack.c.l.b16 %v205
    %v245 = vunpack.c.l.b16 %v206
    %v246 = vunpack.c.l.b16 %v207
    %v247 = vunpack.c.l.b16 %v208
    %v248 = vunpack.c.l.b16 %v209
    %v249 = vunpack.c.l.b16 %v210
    %v250 = vunpack.c.l.b16 %v211
    %v251 = vpack.c.b16 %v236, %v235
    %v252 = vpack.c.b16 %v238, %v237
    %v253 = vpack.c.b16 %v240, %v239
    %v254 = vpack.c.b16 %v242, %v241
    %v255 = vpack.c.b16 %v244, %v243
    %v256 = vpack.c.b16 %v246, %v245
    %v257 = vpack.c.b16 %v248, %v247
    %v258 = vpack.c.b16 %v250, %v249
    %267 = vmatprep.subr.bf16.mxu0 0
    %268 = vmatpush1.bf16.msra.mxu0 %v251
    %269 = vmatprep.subr.bf16.mxu0 0
    %270 = vmatpush1.bf16.msra.mxu0 %v252
    %271 = vmatprep.subr.bf16.mxu0 0
    %272 = vmatpush1.bf16.msra.mxu0 %v253
    %273 = vmatprep.subr.bf16.mxu0 0
    %274 = vmatpush1.bf16.msra.mxu0 %v254
    %275 = vmatprep.subr.bf16.mxu0 0
    %276 = vmatpush1.bf16.msra.mxu0 %v255
    %277 = vmatprep.subr.bf16.mxu0 0
    %278 = vmatpush1.bf16.msra.mxu0 %v256
    %279 = vmatprep.subr.bf16.mxu0 0
    %280 = vmatpush1.bf16.msra.mxu0 %v257
    %281 = vmatprep.subr.bf16.mxu0 0
    %282 = vmatpush1.bf16.msra.mxu0 %v258
    %283 = vmatprep.subr.bf16.mxu0 0
    %284 = vmatpush1.bf16.msra.mxu0 0
    %285 = vmatprep.subr.bf16.mxu0 0
    %286 = vmatpush1.bf16.msra.mxu0 0
    %287 = vmatprep.subr.bf16.mxu0 0
    %288 = vmatpush1.bf16.msra.mxu0 0
    %289 = vmatprep.subr.bf16.mxu0 0
    %290 = vmatpush1.bf16.msra.mxu0 0
    %291 = vmatprep.subr.bf16.mxu0 0
    %292 = vmatpush1.bf16.msra.mxu0 0
    %293 = vmatprep.subr.bf16.mxu0 0
    %294 = vmatpush1.bf16.msra.mxu0 0
    %295 = vmatprep.subr.bf16.mxu0 0
    %296 = vmatpush1.bf16.msra.mxu0 0
    %297 = vmatprep.subr.bf16.mxu0 0
    %298 = vmatpush1.bf16.msra.mxu0 0
    %299 = vmatprep.mubr.bf16.mxu0 0
    %300 = vmatmul.mubr.bf16.gmra.mrb[0].mxu0 %v195
    %v301 = vpop.f32.mrb[0].mxu0
    %v302 = vadd.f32 %v217, %v301
    %v303 = vpop.f32.mrb[0].mxu0
    %v304 = vpop.f32.mrb[0].mxu0
    %v305 = vpop.f32.mrb[0].mxu0
    %306 = vdwg.mxu0
    %v307 = vmax.f32 %v302, 0.0
    %s308 = sadd.s32 %s64, 1013904242
    %s309 = sadd.s32 %s308, %s66
    %s310 = smul.u32 %s309, 2654435761
    %v311 = vstv %s310
    %v312 = vadd.s32 %v73, %v311
    %v313 = vshrl.u32 %v312, 16
    %v314 = vxor.u32 %v312, %v313
    %v315 = vmul.u32 %v314, 2146121005
    %v316 = vshrl.u32 %v315, 15
    %v317 = vxor.u32 %v315, %v316
    %v318 = vmul.u32 %v317, 2221713035
    %v319 = vshrl.u32 %v318, 16
    %v320 = vxor.u32 %v318, %v319
    %v321 = vshrl.u32 %v320, 8
    %v322 = vcvt.s32.f32 %v321
    %v323 = vmul.f32 %v322, 5.9604645e-08
    %vm324 = vcmp.lt.f32.partialorder %v323, 0.5
    %v325 = vmul.f32 %v307, 2.0
    %v326 = vsel %vm324, %v325, 0.0
    %v327 = vpack.c.bf16 %v326, %v326
    %v328 = vld [vmem:[#allocation7] sm:$0xf]
    %v329 = vld [vmem:[#allocation7 + $0x4] sm:$0xf]
    %v330 = vld [vmem:[#allocation7 + $0x8] sm:$0xf]
    %v331 = vld [vmem:[#allocation7 + $0xc] sm:$0xf]
    %v332 = vld [vmem:[#allocation7 + $0x10] sm:$0xf]
    %v333 = vld [vmem:[#allocation7 + $0x14] sm:$0xf]
    %v334 = vld [vmem:[#allocation7 + $0x18] sm:$0xf]
    %v335 = vld [vmem:[#allocation7 + $0x1c] sm:$0xf]
    %v336 = vld [vmem:[#allocation7 + $0x20] sm:$0xf]
    %v337 = vld [vmem:[#allocation7 + $0x24] sm:$0xf]
    %v338 = vld [vmem:[#allocation7 + $0x28] sm:$0xf]
    %v339 = vld [vmem:[#allocation7 + $0x2c] sm:$0xf]
    %v340 = vld [vmem:[#allocation7 + $0x30] sm:$0xf]
    %v341 = vld [vmem:[#allocation7 + $0x34] sm:$0xf]
    %v342 = vld [vmem:[#allocation7 + $0x38] sm:$0xf]
    %v343 = vld [vmem:[#allocation7 + $0x3c] sm:$0xf]
    %v344 = vld [vmem:[%s7] sm:$0x1]
    %v346 = vlaneseq
    %v347 = vshrl.u32 %v346, 7
    %v348 = vsub.s32 0, %v347
    %v349 = vrot.slane %v344, %v348
    %v367 = vunpack.c.l.b16 %v328
    %v368 = vunpack.c.l.b16 %v329
    %v369 = vunpack.c.l.b16 %v330
    %v370 = vunpack.c.l.b16 %v331
    %v371 = vunpack.c.l.b16 %v332
    %v372 = vunpack.c.l.b16 %v333
    %v373 = vunpack.c.l.b16 %v334
    %v374 = vunpack.c.l.b16 %v335
    %v375 = vunpack.c.l.b16 %v336
    %v376 = vunpack.c.l.b16 %v337
    %v377 = vunpack.c.l.b16 %v338
    %v378 = vunpack.c.l.b16 %v339
    %v379 = vunpack.c.l.b16 %v340
    %v380 = vunpack.c.l.b16 %v341
    %v381 = vunpack.c.l.b16 %v342
    %v382 = vunpack.c.l.b16 %v343
    %v383 = vpack.c.b16 %v368, %v367
    %v384 = vpack.c.b16 %v370, %v369
    %v385 = vpack.c.b16 %v372, %v371
    %v386 = vpack.c.b16 %v374, %v373
    %v387 = vpack.c.b16 %v376, %v375
    %v388 = vpack.c.b16 %v378, %v377
    %v389 = vpack.c.b16 %v380, %v379
    %v390 = vpack.c.b16 %v382, %v381
    %399 = vmatprep.subr.bf16.mxu0 0
    %400 = vmatpush1.bf16.msra.mxu0 %v383
    %401 = vmatprep.subr.bf16.mxu0 0
    %402 = vmatpush1.bf16.msra.mxu0 %v384
    %403 = vmatprep.subr.bf16.mxu0 0
    %404 = vmatpush1.bf16.msra.mxu0 %v385
    %405 = vmatprep.subr.bf16.mxu0 0
    %406 = vmatpush1.bf16.msra.mxu0 %v386
    %407 = vmatprep.subr.bf16.mxu0 0
    %408 = vmatpush1.bf16.msra.mxu0 %v387
    %409 = vmatprep.subr.bf16.mxu0 0
    %410 = vmatpush1.bf16.msra.mxu0 %v388
    %411 = vmatprep.subr.bf16.mxu0 0
    %412 = vmatpush1.bf16.msra.mxu0 %v389
    %413 = vmatprep.subr.bf16.mxu0 0
    %414 = vmatpush1.bf16.msra.mxu0 %v390
    %415 = vmatprep.subr.bf16.mxu0 0
    %416 = vmatpush1.bf16.msra.mxu0 0
    %417 = vmatprep.subr.bf16.mxu0 0
    %418 = vmatpush1.bf16.msra.mxu0 0
    %419 = vmatprep.subr.bf16.mxu0 0
    %420 = vmatpush1.bf16.msra.mxu0 0
    %421 = vmatprep.subr.bf16.mxu0 0
    %422 = vmatpush1.bf16.msra.mxu0 0
    %423 = vmatprep.subr.bf16.mxu0 0
    %424 = vmatpush1.bf16.msra.mxu0 0
    %425 = vmatprep.subr.bf16.mxu0 0
    %426 = vmatpush1.bf16.msra.mxu0 0
    %427 = vmatprep.subr.bf16.mxu0 0
    %428 = vmatpush1.bf16.msra.mxu0 0
    %429 = vmatprep.subr.bf16.mxu0 0
    %430 = vmatpush1.bf16.msra.mxu0 0
    %431 = vmatprep.mubr.bf16.mxu0 0
    %432 = vmatmul.mubr.bf16.gmra.mrb[0].mxu0 %v327
    %v433 = vpop.f32.mrb[0].mxu0
    %v434 = vadd.f32 %v349, %v433
    %v435 = vpop.f32.mrb[0].mxu0
    %v436 = vpop.f32.mrb[0].mxu0
    %v437 = vpop.f32.mrb[0].mxu0
    %438 = vdwg.mxu0
    %v439 = vmax.f32 %v434, 0.0
    %s440 = sadd.s32 %s64, 3668340011
    %s441 = sadd.s32 %s440, %s66
    %s442 = smul.u32 %s441, 2654435761
    %v443 = vstv %s442
    %v444 = vadd.s32 %v73, %v443
    %v445 = vshrl.u32 %v444, 16
    %v446 = vxor.u32 %v444, %v445
    %v447 = vmul.u32 %v446, 2146121005
    %v448 = vshrl.u32 %v447, 15
    %v449 = vxor.u32 %v447, %v448
    %v450 = vmul.u32 %v449, 2221713035
    %v451 = vshrl.u32 %v450, 16
    %v452 = vxor.u32 %v450, %v451
    %v453 = vshrl.u32 %v452, 8
    %v454 = vcvt.s32.f32 %v453
    %v455 = vmul.f32 %v454, 5.9604645e-08
    %vm456 = vcmp.lt.f32.partialorder %v455, 0.5
    %v457 = vmul.f32 %v439, 2.0
    %v458 = vsel %vm456, %v457, 0.0
    %v459 = vpack.c.bf16 %v458, %v458
    %v460 = vld [vmem:[%s8] sm:$0xf]
    %v461 = vld [vmem:[%s8 + $0x4] sm:$0xf]
    %v462 = vld [vmem:[%s8 + $0x8] sm:$0xf]
    %v463 = vld [vmem:[%s8 + $0xc] sm:$0xf]
    %v464 = vld [vmem:[%s8 + $0x10] sm:$0xf]
    %v465 = vld [vmem:[%s8 + $0x14] sm:$0xf]
    %v466 = vld [vmem:[%s8 + $0x18] sm:$0xf]
    %v467 = vld [vmem:[%s8 + $0x1c] sm:$0xf]
    %v468 = vld [vmem:[%s8 + $0x20] sm:$0xf]
    %v469 = vld [vmem:[%s8 + $0x24] sm:$0xf]
    %v470 = vld [vmem:[%s8 + $0x28] sm:$0xf]
    %v471 = vld [vmem:[%s8 + $0x2c] sm:$0xf]
    %v472 = vld [vmem:[%s8 + $0x30] sm:$0xf]
    %v473 = vld [vmem:[%s8 + $0x34] sm:$0xf]
    %v474 = vld [vmem:[%s8 + $0x38] sm:$0xf]
    %v475 = vld [vmem:[%s8 + $0x3c] sm:$0xf]
    %v476 = vld [vmem:[%s9] sm:$0x1]
    %v478 = vlaneseq
    %v479 = vshrl.u32 %v478, 7
    %v480 = vsub.s32 0, %v479
    %v481 = vrot.slane %v476, %v480
    %v499 = vunpack.c.l.b16 %v460
    %v500 = vunpack.c.l.b16 %v461
    %v501 = vunpack.c.l.b16 %v462
    %v502 = vunpack.c.l.b16 %v463
    %v503 = vunpack.c.l.b16 %v464
    %v504 = vunpack.c.l.b16 %v465
    %v505 = vunpack.c.l.b16 %v466
    %v506 = vunpack.c.l.b16 %v467
    %v507 = vunpack.c.l.b16 %v468
    %v508 = vunpack.c.l.b16 %v469
    %v509 = vunpack.c.l.b16 %v470
    %v510 = vunpack.c.l.b16 %v471
    %v511 = vunpack.c.l.b16 %v472
    %v512 = vunpack.c.l.b16 %v473
    %v513 = vunpack.c.l.b16 %v474
    %v514 = vunpack.c.l.b16 %v475
    %v515 = vpack.c.b16 %v500, %v499
    %v516 = vpack.c.b16 %v502, %v501
    %v517 = vpack.c.b16 %v504, %v503
    %v518 = vpack.c.b16 %v506, %v505
    %v519 = vpack.c.b16 %v508, %v507
    %v520 = vpack.c.b16 %v510, %v509
    %v521 = vpack.c.b16 %v512, %v511
    %v522 = vpack.c.b16 %v514, %v513
    %531 = vmatprep.subr.bf16.mxu0 0
    %532 = vmatpush1.bf16.msra.mxu0 %v515
    %533 = vmatprep.subr.bf16.mxu0 0
    %534 = vmatpush1.bf16.msra.mxu0 %v516
    %535 = vmatprep.subr.bf16.mxu0 0
    %536 = vmatpush1.bf16.msra.mxu0 %v517
    %537 = vmatprep.subr.bf16.mxu0 0
    %538 = vmatpush1.bf16.msra.mxu0 %v518
    %539 = vmatprep.subr.bf16.mxu0 0
    %540 = vmatpush1.bf16.msra.mxu0 %v519
    %541 = vmatprep.subr.bf16.mxu0 0
    %542 = vmatpush1.bf16.msra.mxu0 %v520
    %543 = vmatprep.subr.bf16.mxu0 0
    %544 = vmatpush1.bf16.msra.mxu0 %v521
    %545 = vmatprep.subr.bf16.mxu0 0
    %546 = vmatpush1.bf16.msra.mxu0 %v522
    %547 = vmatprep.subr.bf16.mxu0 0
    %548 = vmatpush1.bf16.msra.mxu0 0
    %549 = vmatprep.subr.bf16.mxu0 0
    %550 = vmatpush1.bf16.msra.mxu0 0
    %551 = vmatprep.subr.bf16.mxu0 0
    %552 = vmatpush1.bf16.msra.mxu0 0
    %553 = vmatprep.subr.bf16.mxu0 0
    %554 = vmatpush1.bf16.msra.mxu0 0
    %555 = vmatprep.subr.bf16.mxu0 0
    %556 = vmatpush1.bf16.msra.mxu0 0
    %557 = vmatprep.subr.bf16.mxu0 0
    %558 = vmatpush1.bf16.msra.mxu0 0
    %559 = vmatprep.subr.bf16.mxu0 0
    %560 = vmatpush1.bf16.msra.mxu0 0
    %561 = vmatprep.subr.bf16.mxu0 0
    %562 = vmatpush1.bf16.msra.mxu0 0
    %563 = vmatprep.mubr.bf16.mxu0 0
    %564 = vmatmul.mubr.bf16.gmra.mrb[0].mxu0 %v459
    %v565 = vpop.f32.mrb[0].mxu0
    %v566 = vadd.f32 %v481, %v565
    %v567 = vpop.f32.mrb[0].mxu0
    %v568 = vpop.f32.mrb[0].mxu0
    %v569 = vpop.f32.mrb[0].mxu0
    %570 = vdwg.mxu0
    %vm571 = vcmask 130048
    %572 = vst.msk [vmem:[#allocation9] sm:$0xff] %vm571, %v566
    // Predicated region
    $region46: #{tpu_custom_call.1} parent=1 // pred_check
      _
    $region47: #{tpu_custom_call.1} parent=1 // pred_check_branch
      %574 = sbr.rel (0) target = $region49
    $region48: #{tpu_custom_call.1} parent=1 // pred_region
      %s576 = ssub.s32 128, 128
      %577 = vsyncadd [#allocation6], %s576
      %s579 = sshll.u32 [#allocation9], 4
      %s580 = int_to_ptr.vmem [resolvable:$true] %s579
      %582 = dma.vmem_to_hbm [thread:$0]  %s580, 128, %s10, [#allocation6]
    $region49: #{tpu_custom_call.1} parent=1 // pred_fallthru
      _
    // Predicated region
    $region50: #{tpu_custom_call.1} parent=1 // pred_check
      _
    $region51: #{tpu_custom_call.1} parent=1 // pred_check_branch
      %584 = sbr.rel (0) target = $region53
    $region52: #{tpu_custom_call.1} parent=1 // pred_region
      %585 = dma.done [#allocation6], 128
    $region53: #{tpu_custom_call.1} parent=1 // pred_fallthru
      _
    %586 = vsyncpa [#allocation5], 1
    %587 = vsyncpa [#allocation8], 1
    %588 = vsyncpa [#allocation6], 1

</llo_original>
